<compile_context>
chip_gen: v6e
topology: v6e:2x2x1
jax: 0.10.0
libtpu: 0.0.40
codegen_flags: <defaults>
</compile_context>

<pallas_src>
import functools

import jax
import jax.numpy as jnp
from jax.experimental import pallas as pl
from jax.experimental.pallas import tpu as pltpu


def _round_up(x, m):
    return ((x + m - 1) // m) * m


# ---------------------------------------------------------------------------
# Kernel 1: elementwise neg-errors + one-hot foreground map, (C, TILE1) blocks.
# ---------------------------------------------------------------------------
def _error_onehot_kernel(probs_ref, tgt_ref, negerr_ref, fg_ref):
    probs = probs_ref[...]                                    # (C, T) f32
    tgt = tgt_ref[...]                                        # (1, T) i32
    C, T = probs.shape
    class_ids = jax.lax.broadcasted_iota(jnp.int32, (C, T), 0)
    is_fg = tgt == class_ids                                  # one-hot (sublanes)
    fg = is_fg.astype(jnp.float32)
    negerr_ref[...] = -jnp.abs(fg - probs)                    # -(|target_c - input_c|)
    fg_ref[...] = is_fg.astype(jnp.bfloat16)                  # exact 0/1, narrow


# ---------------------------------------------------------------------------
# Kernel 2: lovasz_grad + per-class dot + mean, wide blocks over P w/ carries.
# ---------------------------------------------------------------------------
def _lovasz_kernel(gts_ref, negerr_ref, fg_ref, out_ref,
                   cum_ref, prevjac_ref, loss_ref, *, sub):
    pid = pl.program_id(0)
    nsteps = pl.num_programs(0)
    C, BLK = negerr_ref.shape
    K = BLK // sub                                            # static sub-chunks

    @pl.when(pid == 0)
    def _init():
        cum_ref[...] = jnp.zeros_like(cum_ref)
        prevjac_ref[...] = jnp.zeros_like(prevjac_ref)
        loss_ref[...] = jnp.zeros_like(loss_ref)

    gts = gts_ref[...]                                        # (C, 1) f32
    lane = jax.lax.broadcasted_iota(jnp.int32, (C, sub), 1)   # hoisted once
    base = pid * BLK                                          # global block offset

    cum = cum_ref[...]                                        # (C, 1) carries
    prevjac = prevjac_ref[...]
    loss = loss_ref[...]

    for k in range(K):                                        # static unroll (K <= 32)
        negerr = negerr_ref[:, k * sub:(k + 1) * sub]         # (C, S) f32, sorted asc
        fg = fg_ref[:, k * sub:(k + 1) * sub].astype(jnp.float32)   # (C, S) 0/1

        # Inclusive prefix sum along lanes: log2(S)-step roll+masked-add scan
        # (XLU + VPU only; exact — counts per sub-chunk <= S fit in f32).
        csum = fg
        d = 1
        while d < sub:
            csum = csum + jnp.where(lane >= d,
                                    pltpu.roll(csum, shift=d, axis=1), 0.0)
            d *= 2
        cum_fg = cum + csum                                   # global cumsum(fg)

        pos = (lane + (base + k * sub + 1)).astype(jnp.float32)   # 1-based position
        union = gts + (pos - cum_fg)                          # gts + cumsum(1-fg) >= 1
        jaccard = 1.0 - (gts - cum_fg) / union

        # grad[i] = jaccard[i] - jaccard[i-1]; at global pos 0 prev = 0 (init).
        prev = jnp.where(lane == 0, prevjac,
                         pltpu.roll(jaccard, shift=1, axis=1))
        grad = jaccard - prev

        # loss_c accumulates sum(negerr * grad) = -sum(err * grad).
        loss = loss + jnp.sum(negerr * grad, axis=1, keepdims=True)
        cum = cum_fg[:, sub - 1:sub]
        prevjac = jaccard[:, sub - 1:sub]

    cum_ref[...] = cum
    prevjac_ref[...] = prevjac
    loss_ref[...] = loss

    @pl.when(pid == nsteps - 1)
    def _finalize():
        out_ref[...] = jnp.sum(loss_ref[...], axis=0, keepdims=True) * (-1.0 / C)


# ---------------------------------------------------------------------------
# Wrapper
# ---------------------------------------------------------------------------
def lovasz_softmax(inputs, targets):
    """Forward of LovaszSoftmax (reduction='mean'). inputs: NCHW/NCDHW probs."""
    assert inputs.ndim in (4, 5)
    C = inputs.shape[1]

    # (N, C, *spatial) -> (C, P); P ordered as (n, *spatial) == prob_flatten.
    perm = (1, 0) + tuple(range(2, inputs.ndim))
    probs = jnp.transpose(inputs, perm).reshape(C, -1).astype(jnp.float32)
    tgt = targets.reshape(1, -1).astype(jnp.int32)
    P = probs.shape[1]

    # --- tiling --------------------------------------------------------------
    # Sub-chunk S bounds vreg pressure of the per-sub-chunk elementwise chain.
    if C <= 8:
        S = 512
    elif C <= 16:
        S = 256
    else:
        S = 128
    # Kernel-2 block = K statically-unrolled sub-chunks (amortizes grid overhead).
    K = min(32, pl.cdiv(P, S))
    BLK = S * K
    n_blocks = pl.cdiv(P, BLK)
    # Kernel-1 tile = several kernel-2 blocks under an ~8 MiB/step VMEM budget
    # (double-buffered it stays well inside the 32 MiB scoped limit; VMEM-flat
    # across v5e/v6e/v7x).
    bytes_per_lane = C * (4 + 4 + 2) + 4
    K1 = max(1, min(n_blocks, (8 * 1024 * 1024) // (bytes_per_lane * BLK)))
    TILE1 = BLK * K1
    P_pad = _round_up(P, TILE1)

    if P_pad != P:                                  # loss-neutral padding
        probs = jnp.pad(probs, ((0, 0), (0, P_pad - P)))
        tgt = jnp.pad(tgt, ((0, 0), (0, P_pad - P)), constant_values=-1)

    # --- kernel 1: neg-errors + bf16 one-hot foreground, parallel over P -----
    negerr, fg = pl.pallas_call(
        _error_onehot_kernel,
        grid=(P_pad // TILE1,),
        out_shape=(jax.ShapeDtypeStruct((C, P_pad), jnp.float32),
                   jax.ShapeDtypeStruct((C, P_pad), jnp.bfloat16)),
        in_specs=[pl.BlockSpec((C, TILE1), lambda i: (0, i)),
                  pl.BlockSpec((1, TILE1), lambda i: (0, i))],
        out_specs=(pl.BlockSpec((C, TILE1), lambda i: (0, i)),
                   pl.BlockSpec((C, TILE1), lambda i: (0, i))),
        compiler_params=pltpu.CompilerParams(
            dimension_semantics=("parallel",),
            vmem_limit_bytes=32 * 1024 * 1024),
    )(probs, tgt)

    # --- per-class sort (ascending on neg_err == descending on err) ----------
    # TODO(synk): no clean Pallas TPU sort primitive; jax.lax.sort stays in glue.
    negerr_sorted, fg_sorted = jax.lax.sort((negerr, fg), dimension=1, num_keys=1)
    gts = jnp.sum(fg, axis=1, keepdims=True, dtype=jnp.float32)   # (C,1) counts

    # --- kernel 2: lovasz_grad + per-class dot + mean, chunked over P --------
    out = pl.pallas_call(
        functools.partial(_lovasz_kernel, sub=S),
        grid=(P_pad // BLK,),
        out_shape=jax.ShapeDtypeStruct((1, 1), jnp.float32),
        in_specs=[pl.BlockSpec((C, 1), lambda i: (0, 0)),
                  pl.BlockSpec((C, BLK), lambda i: (0, i)),
                  pl.BlockSpec((C, BLK), lambda i: (0, i))],
        out_specs=pl.BlockSpec((1, 1), lambda i: (0, 0)),
        scratch_shapes=[pltpu.VMEM((C, 1), jnp.float32),    # running cumsum(fg)
                        pltpu.VMEM((C, 1), jnp.float32),    # previous jaccard
                        pltpu.VMEM((C, 1), jnp.float32)],   # per-class loss acc
        compiler_params=pltpu.CompilerParams(
            dimension_semantics=("arbitrary",),
            vmem_limit_bytes=32 * 1024 * 1024),
    )(gts, negerr_sorted, fg_sorted)
    return out[0, 0]


def _reference(inputs, targets):
    """Pure-JAX reference mirroring the PyTorch forward (reduction='mean')."""
    C = inputs.shape[1]
    x = jnp.transpose(inputs, (0, 2, 3, 1)).reshape(-1, C)
    t = targets.reshape(-1)
    losses = []
    for c in range(C):
        fgc = (t == c).astype(jnp.float32)
        errc = jnp.abs(fgc - x[:, c])
        order = jnp.argsort(-errc)
        errs = errc[order]
        fgs = fgc[order]
        gts = fgs.sum()
        inter = gts - jnp.cumsum(fgs)
        union = gts + jnp.cumsum(1.0 - fgs)
        jac = 1.0 - inter / union
        grad = jnp.concatenate([jac[:1], jac[1:] - jac[:-1]])
        losses.append(jnp.dot(errs, grad))
    return jnp.mean(jnp.stack(losses))


if __name__ == "__main__":
    key = jax.random.PRNGKey(0)
    k1, k2 = jax.random.split(key)
    N, C, H, W = 2, 4, 16, 16
    logits = jax.random.normal(k1, (N, C, H, W), dtype=jnp.float32)
    probs = jax.nn.softmax(logits, axis=1)                  # NCHW probabilities
    targets = jax.random.randint(k2, (N, H, W), 0, C, dtype=jnp.int32)

    loss = jax.block_until_ready(lovasz_softmax(probs, targets))
    ref = jax.block_until_ready(_reference(probs, targets))
    assert jnp.allclose(loss, ref, atol=1e-5, rtol=1e-5), (loss, ref)

    print("KERNEL_OK")
</pallas_src>

<mosaic_0001>
module attributes {stable_mosaic.version = 11 : i64} {
  func.func @_error_onehot_kernel(%arg0: i32, %arg1: memref<4x512xf32, #tpu.memory_space<vmem>>, %arg2: memref<1x512xi32, #tpu.memory_space<vmem>>, %arg3: memref<4x512xf32, #tpu.memory_space<vmem>>, %arg4: memref<4x512xbf16, #tpu.memory_space<vmem>>) attributes {dimension_semantics = [#tpu.dimension_semantics<parallel>], iteration_bounds = array<i64: 1>, scalar_prefetch = 0 : i64, scratch_operands = 0 : i64, tpu.core_type = #tpu.core_type<tc>, window_params = [{transform_indices = @transform_0, window_bounds = array<i64: 4, 512>}, {transform_indices = @transform_1, window_bounds = array<i64: 1, 512>}, {transform_indices = @transform_2, window_bounds = array<i64: 4, 512>}, {transform_indices = @transform_3, window_bounds = array<i64: 4, 512>}]} {
    %c0 = arith.constant 0 : index
    %c0_0 = arith.constant 0 : index
    %0 = vector.load %arg1[%c0, %c0_0] : memref<4x512xf32, #tpu.memory_space<vmem>>, vector<4x512xf32>
    %c0_1 = arith.constant 0 : index
    %c0_2 = arith.constant 0 : index
    %1 = vector.load %arg2[%c0_1, %c0_2] : memref<1x512xi32, #tpu.memory_space<vmem>>, vector<1x512xi32>
    %2 = tpu.iota {dimensions = array<i32: 0>} : vector<4x512xi32>
    %3 = vector.broadcast %1 : vector<1x512xi32> to vector<4x512xi32>
    %4 = arith.cmpi eq, %3, %2 : vector<4x512xi32>
    %5 = arith.extui %4 : vector<4x512xi1> to vector<4x512xi32>
    %6 = arith.sitofp %5 : vector<4x512xi32> to vector<4x512xf32>
    %7 = arith.subf %6, %0 : vector<4x512xf32>
    %8 = math.absf %7 : vector<4x512xf32>
    %cst = arith.constant 0.000000e+00 : f32
    %9 = vector.broadcast %cst : f32 to vector<4x512xf32>
    %10 = arith.subf %9, %8 : vector<4x512xf32>
    %c0_3 = arith.constant 0 : index
    %c0_4 = arith.constant 0 : index
    %11 = vector.load %arg3[%c0_3, %c0_4] : memref<4x512xf32, #tpu.memory_space<vmem>>, vector<4x512xf32>
    tpu.vector_store %arg3[%c0_3, %c0_4], %10 {strides = array<i32>} : memref<4x512xf32, #tpu.memory_space<vmem>>, vector<4x512xf32>,
    %12 = arith.extui %4 : vector<4x512xi1> to vector<4x512xi32>
    %13 = arith.sitofp %12 : vector<4x512xi32> to vector<4x512xf32>
    %14 = arith.truncf %13 : vector<4x512xf32> to vector<4x512xbf16>
    %c0_5 = arith.constant 0 : index
    %c0_6 = arith.constant 0 : index
    %15 = vector.load %arg4[%c0_5, %c0_6] : memref<4x512xbf16, #tpu.memory_space<vmem>>, vector<4x512xbf16>
    tpu.vector_store %arg4[%c0_5, %c0_6], %14 {strides = array<i32>} : memref<4x512xbf16, #tpu.memory_space<vmem>>, vector<4x512xbf16>,
    return
  }
  func.func @transform_0(%arg0: i32) -> (i32, i32) {
    %c0_i32 = arith.constant 0 : i32
    %c0_i32_0 = arith.constant 0 : i32
    return %c0_i32, %arg0 : i32, i32
  }
  func.func @transform_1(%arg0: i32) -> (i32, i32) {
    %c0_i32 = arith.constant 0 : i32
    %c0_i32_0 = arith.constant 0 : i32
    return %c0_i32, %arg0 : i32, i32
  }
  func.func @transform_2(%arg0: i32) -> (i32, i32) {
    %c0_i32 = arith.constant 0 : i32
    %c0_i32_0 = arith.constant 0 : i32
    return %c0_i32, %arg0 : i32, i32
  }
  func.func @transform_3(%arg0: i32) -> (i32, i32) {
    %c0_i32 = arith.constant 0 : i32
    %c0_i32_0 = arith.constant 0 : i32
    return %c0_i32, %arg0 : i32, i32
  }
}

</mosaic_0001>

<llo_original>
// kernel: tpu_custom_call.1
$region0: #{tpu_custom_call.1}
  #allocation0 [shape = 'u32[]', space=smem, size = 0x4, offset = 0x4, fixed_abs, tag = 'smem constant byte address 0x4 - core index']
  #allocation1 [shape = 'u32[144,128]{1,0:T(1,128)}', space=vmem, size = 0x12000, scoped, tag = 'internal scratch']
  %s0 = inlined_call_operand.hbm [shape: f32[4,512], index: 0, kind: input, shape index: {}]
  %s1 = inlined_call_operand.hbm [shape: s32[1,512], index: 1, kind: input, shape index: {}]
  %s2 = inlined_call_operand.hbm [shape: f32[4,512], index: 2, kind: output, shape index: {0}]
  %s3 = inlined_call_operand.hbm [shape: bf16[4,512], index: 3, kind: output, shape index: {1}]
  %4 = xla_tuple %s2, %s3
  %s5 = sld [smem:[#allocation0]]
  $region34: #{tpu_custom_call.1} parent=0
    _
  %s7 = ssub.s32 1, %s5
  %s8 = scalar_select 0, %s7, %s5
  $region1: #{tpu_custom_call.1} parent=0
    #allocation2 [shape = 'u8[8192]{0}', space=vmem, size = 0x2000, scoped, tag = 'input window, operand 0, single buffered']
    #allocation3 [shape = 's32[1]{0}', space=sflag, size = 0x4, scoped, tag = 'scoped memory for tpu_custom_call.1']
    #allocation4 [shape = 's32[1]{0}', space=sflag, size = 0x4, scoped, tag = 'scoped memory for tpu_custom_call.1']
    #allocation5 [shape = 'u8[2048]{0}', space=vmem, size = 0x800, scoped, tag = 'input window, operand 1, single buffered']
    #allocation6 [shape = 's32[1]{0}', space=sflag, size = 0x4, scoped, tag = 'scoped memory for tpu_custom_call.1']
    #allocation7 [shape = 'u8[8192]{0}', space=vmem, size = 0x2000, scoped, tag = 'output window, operand 0, single buffered']
    #allocation8 [shape = 'u8[4096]{0}', space=vmem, size = 0x1000, scoped, tag = 'output window, operand 1, single buffered']
    #allocation9 [shape = 's32[1]{0}', space=sflag, size = 0x4, scoped, tag = 'scoped memory for tpu_custom_call.1']
    %9 = vsyncpa [#allocation3], 0
    %10 = vsyncpa [#allocation6], 0
    %11 = vsyncpa [#allocation4], 0
    %12 = vsyncpa [#allocation9], 0
    // Predicated region
    $region2: #{tpu_custom_call.1} parent=1 // pred_check
      _
    $region3: #{tpu_custom_call.1} parent=1 // pred_check_branch
      %14 = sbr.rel (0) target = $region5
    $region4: #{tpu_custom_call.1} parent=1 // pred_region
      %s16 = ssub.s32 256, 256
      %17 = vsyncadd [#allocation3], %s16
      %s19 = sshll.u32 [#allocation2], 4
      %s20 = int_to_ptr.vmem [resolvable:$true] %s19
      %22 = dma.hbm_to_vmem [thread:$0]  %s0, 256, %s20, [#allocation3]
    $region5: #{tpu_custom_call.1} parent=1 // pred_fallthru
      _
    // Predicated region
    $region6: #{tpu_custom_call.1} parent=1 // pred_check
      _
    $region7: #{tpu_custom_call.1} parent=1 // pred_check_branch
      %24 = sbr.rel (0) target = $region9
    $region8: #{tpu_custom_call.1} parent=1 // pred_region
      %s26 = ssub.s32 64, 64
      %27 = vsyncadd [#allocation6], %s26
      %s29 = sshll.u32 [#allocation5], 4
      %s30 = int_to_ptr.vmem [resolvable:$true] %s29
      %32 = dma.hbm_to_vmem [thread:$0]  %s1, 64, %s30, [#allocation6]
    $region9: #{tpu_custom_call.1} parent=1 // pred_fallthru
      _
    // Predicated region
    $region10: #{tpu_custom_call.1} parent=1 // pred_check
      _
    $region11: #{tpu_custom_call.1} parent=1 // pred_check_branch
      %34 = sbr.rel (0) target = $region13
    $region12: #{tpu_custom_call.1} parent=1 // pred_region
      %35 = dma.done [#allocation3], 256
    $region13: #{tpu_custom_call.1} parent=1 // pred_fallthru
      _
    // Predicated region
    $region14: #{tpu_custom_call.1} parent=1 // pred_check
      _
    $region15: #{tpu_custom_call.1} parent=1 // pred_check_branch
      %37 = sbr.rel (0) target = $region17
    $region16: #{tpu_custom_call.1} parent=1 // pred_region
      %38 = dma.done [#allocation6], 64
    $region17: #{tpu_custom_call.1} parent=1 // pred_fallthru
      _
    %v39 = vld [vmem:[#allocation2] sm:$0xff]
    %v40 = vld [vmem:[#allocation2 + $0x8] sm:$0xff]
    %v41 = vld [vmem:[#allocation5] sm:$0xf]
    %v42 = vlaneseq
    %v43 = vshrl.u32 %v42, 7
    %v44 = vlaneseq
    %v45 = vshrl.u32 %v44, 7
    %v46 = vsub.s32 0, %v45
    %v47 = vrot.slane %v41, %v46
    %v48 = vlaneseq
    %v49 = vshrl.u32 %v48, 7
    %v50 = vsub.s32 1, %v49
    %v51 = vrot.slane %v41, %v50
    %v52 = vlaneseq
    %v53 = vshrl.u32 %v52, 7
    %v54 = vsub.s32 2, %v53
    %v55 = vrot.slane %v41, %v54
    %v56 = vlaneseq
    %v57 = vshrl.u32 %v56, 7
    %v58 = vsub.s32 3, %v57
    %v59 = vrot.slane %v41, %v58
    %vm60 = vcmp.eq.s32.totalorder %v47, %v43
    %vm61 = vcmp.eq.s32.totalorder %v51, %v43
    %vm62 = vcmp.eq.s32.totalorder %v55, %v43
    %vm63 = vcmp.eq.s32.totalorder %v59, %v43
    %v64 = vsel %vm60, 1, 0
    %v65 = vsel %vm61, 1, 0
    %v66 = vsel %vm62, 1, 0
    %v67 = vsel %vm63, 1, 0
    %v68 = vcvt.s32.f32 %v64
    %v69 = vcvt.s32.f32 %v65
    %v70 = vcvt.s32.f32 %v66
    %v71 = vcvt.s32.f32 %v67
    %v74 = vcombine.high %v39, %v39
    %v75 = vcombine.high %v40, %v40
    %v78 = vsub.f32 %v68, %v39
    %v79 = vsub.f32 %v69, %v74
    %v80 = vsub.f32 %v70, %v40
    %v81 = vsub.f32 %v71, %v75
    %v82 = vand.u32 2147483647, %v78
    %v83 = vand.u32 2147483647, %v79
    %v84 = vand.u32 2147483647, %v80
    %v85 = vand.u32 2147483647, %v81
    %v86 = vsub.f32 0.0, %v82
    %v87 = vsub.f32 0.0, %v83
    %v88 = vsub.f32 0.0, %v84
    %v89 = vsub.f32 0.0, %v85
    %v94 = vcombine.low %v86, %v87
    %v95 = vcombine.low %v88, %v89
    %98 = vst [vmem:[#allocation7] sm:$0xff] %v94
    %99 = vst [vmem:[#allocation7 + $0x8] sm:$0xff] %v95
    %v100 = vpack.c.bf16 %v68, %v68
    %v101 = vpack.c.bf16 %v69, %v69
    %v102 = vpack.c.bf16 %v70, %v70
    %v103 = vpack.c.bf16 %v71, %v71
    %v108 = vcombine.low %v100, %v101
    %v109 = vcombine.low %v102, %v103
    %v111 = vunpack.c.l.s4 1983009808
    %v112 = vunpack.c.0.s8 %v111
    %v113 = vlaneseq
    %v114 = vshrl.u32 %v113, 7
    %v115 = vsub.s32 %v112, %v114
    %v116 = vrot.slane %v108, %v115
    %v118 = vunpack.c.l.s4 1983009808
    %v119 = vunpack.c.0.s8 %v118
    %v120 = vlaneseq
    %v121 = vshrl.u32 %v120, 7
    %v122 = vsub.s32 %v119, %v121
    %v123 = vrot.slane %v109, %v122
    %v124 = vcombine.low %v116, %v123
    %126 = vst [vmem:[#allocation8] sm:$0xff] %v124
    // Predicated region
    $region18: #{tpu_custom_call.1} parent=1 // pred_check
      _
    $region19: #{tpu_custom_call.1} parent=1 // pred_check_branch
      %128 = sbr.rel (0) target = $region21
    $region20: #{tpu_custom_call.1} parent=1 // pred_region
      %s130 = ssub.s32 256, 256
      %131 = vsyncadd [#allocation4], %s130
      %s133 = sshll.u32 [#allocation7], 4
      %s134 = int_to_ptr.vmem [resolvable:$true] %s133
      %136 = dma.vmem_to_hbm [thread:$0]  %s134, 256, %s2, [#allocation4]
    $region21: #{tpu_custom_call.1} parent=1 // pred_fallthru
      _
    // Predicated region
    $region22: #{tpu_custom_call.1} parent=1 // pred_check
      _
    $region23: #{tpu_custom_call.1} parent=1 // pred_check_branch
      %138 = sbr.rel (0) target = $region25
    $region24: #{tpu_custom_call.1} parent=1 // pred_region
      %s140 = ssub.s32 128, 128
      %141 = vsyncadd [#allocation9], %s140
      %s143 = sshll.u32 [#allocation8], 4
      %s144 = int_to_ptr.vmem [resolvable:$true] %s143
      %146 = dma.vmem_to_hbm [thread:$0]  %s144, 128, %s3, [#allocation9]
    $region25: #{tpu_custom_call.1} parent=1 // pred_fallthru
      _
    // Predicated region
    $region26: #{tpu_custom_call.1} parent=1 // pred_check
      _
    $region27: #{tpu_custom_call.1} parent=1 // pred_check_branch
      %148 = sbr.rel (0) target = $region29
    $region28: #{tpu_custom_call.1} parent=1 // pred_region
      %149 = dma.done [#allocation4], 256
    $region29: #{tpu_custom_call.1} parent=1 // pred_fallthru
      _
    // Predicated region
    $region30: #{tpu_custom_call.1} parent=1 // pred_check
      _
    $region31: #{tpu_custom_call.1} parent=1 // pred_check_branch
      %151 = sbr.rel (0) target = $region33
    $region32: #{tpu_custom_call.1} parent=1 // pred_region
      %152 = dma.done [#allocation9], 128
    $region33: #{tpu_custom_call.1} parent=1 // pred_fallthru
      _
    %153 = vsyncpa [#allocation3], 1
    %154 = vsyncpa [#allocation6], 1
    %155 = vsyncpa [#allocation4], 1
    %156 = vsyncpa [#allocation9], 1

</llo_original>
